<compile_context>
chip_gen: v6e
topology: v6e:2x2x1
jax: 0.10.0
libtpu: 0.0.40
codegen_flags: <defaults>
</compile_context>

<pallas_src>
import functools

import jax
import jax.numpy as jnp
from jax.experimental import pallas as pl
from jax.experimental.pallas import tpu as pltpu


def _round_up(v, m):
    return (v + m - 1) // m * m


def resblock_kernel(x_ref, w1_ref, b1_ref, w2_ref, b2_ref, mask_ref, out_ref, *, W):
    # x_ref   : (Cp, L)        activations; channels on sublanes, flat (batch, h, w) on lanes
    # w1_ref  : (Coutp, 9*Cp)  conv1 im2col weights, column index = (kh*3+kw)*Cp + cin
    # b1_ref  : (Coutp, 1)
    # w2_ref  : (Coutp, 9*Coutp)
    # b2_ref  : (Coutp, 1)
    # mask_ref: (9, L)         per-tap boundary masks (1.0 interior, 0.0 where the tap
    #                          would read SAME-conv zero padding / a wrapped pixel)
    # out_ref : (Coutp, L)
    Cp, L = x_ref.shape

    x = x_ref[...].astype(jnp.float32)
    masks = mask_ref[...]                      # (9, L), stays in vregs

    def conv3x3(act, w_mat, bias):
        # act: (Cin_p, L) -> (Coutp, L). 3x3 SAME conv as ONE im2col GEMM:
        # the 9 lane-rolled (and boundary-masked) windows are stacked on the sublane
        # axis and contracted against the (Coutp, 9*Cin_p) weight on the MXU.
        slabs = []
        for kh in range(3):
            for kw in range(3):
                t = kh * 3 + kw
                s = (kh - 1) * W + (kw - 1)    # lane offset this tap reads from
                if s == 0:
                    slab = act                 # center tap: no shift, no mask
                else:
                    # slab[i] = act[(i + s) mod L]; wrapped positions are masked below.
                    slab = pltpu.roll(act, shift=(-s) % L, axis=1)
                    slab = slab * masks[t:t + 1, :]
                slabs.append(slab)
        stack = jnp.concatenate(slabs, axis=0)            # (9*Cin_p, L), sublane-aligned
        return jnp.dot(w_mat, stack,
                       preferred_element_type=jnp.float32) + bias

    act1 = jnp.maximum(conv3x3(x, w1_ref[...], b1_ref[...]), 0.0)   # conv1 + bias + ReLU
    res = conv3x3(act1, w2_ref[...], b2_ref[...])                   # conv2 + bias
    out_ref[...] = (x + res).astype(out_ref.dtype)                  # residual, lane-dense store


def _pick_nb(N, Cp, HW, *, vmem_budget):
    """Largest divisor of N that fits the VMEM budget and (if possible) leaves >= 2
    grid steps so both v7x TensorCores get work via dimension_semantics."""
    def fits(nb):
        # in + out blocks, double-buffered: ~ 2 * 2 * nb * Cp * HW * 4 bytes, keep headroom.
        return 4 * nb * Cp * HW * 4 <= max(vmem_budget // 2, 1)

    divisors = [d for d in range(1, N + 1) if N % d == 0 and fits(d)]
    if not divisors:
        return 1
    two_step = [d for d in divisors if N // d >= 2]
    return max(two_step) if two_step else max(divisors)


def resblock_forward(x, w1, b1, w2, b2, *, vmem_limit_bytes=32 * 1024 * 1024):
    """x: (N, C, H, W) NCHW; w*: (Cout, Cin, 3, 3) OIHW; b*: (Cout,). Returns NCHW."""
    N, C, H, W = x.shape
    Cout = w1.shape[0]
    assert C == Cout, "ResBlock residual add requires inFe == outFe"
    HW = H * W
    assert HW % 128 == 0, "lane-dense layout assumes H*W is a multiple of 128"

    # Pad channels to the sublane tile (8) so every slab / concat / store is aligned.
    # No-op for realistic channel counts; padded rows are zero and are sliced off below.
    Cp = _round_up(C, 8)
    Coutp = _round_up(Cout, 8)

    # im2col-ready weights (prepared once; in a real model this lives with the params).
    def prep_w(w, co_p, ci_p):
        co, ci = w.shape[0], w.shape[1]
        wp = jnp.pad(w, ((0, co_p - co), (0, ci_p - ci), (0, 0), (0, 0)))
        # column index = (kh*3 + kw) * ci_p + cin
        return jnp.transpose(wp, (0, 2, 3, 1)).reshape(co_p, 9 * ci_p).astype(jnp.float32)

    w1s = prep_w(w1, Coutp, Cp)                                   # (Coutp, 9*Cp)
    w2s = prep_w(w2, Coutp, Coutp)                                # (Coutp, 9*Coutp)
    b1r = jnp.pad(b1, (0, Coutp - Cout)).reshape(Coutp, 1).astype(jnp.float32)
    b2r = jnp.pad(b2, (0, Coutp - Cout)).reshape(Coutp, 1).astype(jnp.float32)

    # Batch elements per grid step (>= 2 grid steps when N >= 2, VMEM-budget bounded).
    Nb = _pick_nb(N, Cp, HW, vmem_budget=vmem_limit_bytes)
    L = Nb * HW

    # Per-tap boundary masks for the flattened (batch-folded) lane layout. Tap (kh, kw)
    # reads input (h+kh-1, w+kw-1); positions where that falls in the SAME-conv zero
    # padding (or would wrap across a row / batch-element boundary after the roll) are 0.
    hh = jnp.arange(HW, dtype=jnp.int32) // W
    ww = jnp.arange(HW, dtype=jnp.int32) % W
    tap_masks = []
    for kh in range(3):
        for kw in range(3):
            m = jnp.ones((HW,), jnp.float32)
            if kh == 0:
                m = m * (hh != 0)
            if kh == 2:
                m = m * (hh != H - 1)
            if kw == 0:
                m = m * (ww != 0)
            if kw == 2:
                m = m * (ww != W - 1)
            tap_masks.append(m)
    masks = jnp.tile(jnp.stack(tap_masks, axis=0), (1, Nb))       # (9, L)

    # Batch folded onto the lane axis: (Cp, N*HW), lane index = n*HW + h*W + w.
    xt = jnp.transpose(x.reshape(N, C, HW), (1, 0, 2)).reshape(C, N * HW)
    if Cp != C:
        xt = jnp.concatenate([xt, jnp.zeros((Cp - C, N * HW), xt.dtype)], axis=0)

    kernel = functools.partial(resblock_kernel, W=W)
    out = pl.pallas_call(
        kernel,
        out_shape=jax.ShapeDtypeStruct((Coutp, N * HW), x.dtype),
        grid=(N // Nb,),
        in_specs=[
            pl.BlockSpec((Cp, L), lambda n: (0, n)),              # activations
            pl.BlockSpec((Coutp, 9 * Cp), lambda n: (0, 0)),      # conv1 weights (resident)
            pl.BlockSpec((Coutp, 1), lambda n: (0, 0)),
            pl.BlockSpec((Coutp, 9 * Coutp), lambda n: (0, 0)),   # conv2 weights (resident)
            pl.BlockSpec((Coutp, 1), lambda n: (0, 0)),
            pl.BlockSpec((9, L), lambda n: (0, 0)),               # boundary masks (resident)
        ],
        out_specs=pl.BlockSpec((Coutp, L), lambda n: (0, n)),
        compiler_params=pltpu.CompilerParams(
            dimension_semantics=("parallel",),   # batch steps independent -> megacore on v7x
            vmem_limit_bytes=vmem_limit_bytes,   # explicit (v5e default scoped VMEM is 16 MiB)
        ),
    )(xt, w1s, b1r, w2s, b2r, masks)

    out = out[:Cout]                                               # drop channel padding
    return jnp.transpose(out.reshape(Cout, N, HW), (1, 0, 2)).reshape(N, Cout, H, W)


def resblock_ref(x, w1, b1, w2, b2):
    """Pure-JAX reference (same semantics as the PyTorch module, NCHW/OIHW layout)."""
    dn = ("NCHW", "OIHW", "NCHW")
    r = jax.lax.conv_general_dilated(x, w1, (1, 1), "SAME", dimension_numbers=dn)
    r = r + b1[None, :, None, None]
    r = jnp.maximum(r, 0.0)
    r = jax.lax.conv_general_dilated(r, w2, (1, 1), "SAME", dimension_numbers=dn)
    r = r + b2[None, :, None, None]
    return x + r


if __name__ == "__main__":
    key = jax.random.PRNGKey(0)
    k1, k2, k3, k4, k5 = jax.random.split(key, 5)

    # Small shapes matching the module: batch=2, channels=4 (inFe == outFe), 16x16.
    N, C, H, W = 2, 4, 16, 16
    x = jax.random.normal(k1, (N, C, H, W), jnp.float32)

    # Conv2d(inFe, outFe, 3, 1, 1) parameter shapes (OIHW).
    w1 = 0.1 * jax.random.normal(k2, (C, C, 3, 3), jnp.float32)
    b1 = 0.1 * jax.random.normal(k3, (C,), jnp.float32)
    w2 = 0.1 * jax.random.normal(k4, (C, C, 3, 3), jnp.float32)
    b2 = 0.1 * jax.random.normal(k5, (C,), jnp.float32)

    out = resblock_forward(x, w1, b1, w2, b2)
    jax.block_until_ready(out)

    ref = resblock_ref(x, w1, b1, w2, b2)
    assert out.shape == ref.shape == (N, C, H, W)
    max_err = float(jnp.max(jnp.abs(out - ref)))
    assert jnp.allclose(out, ref, atol=1e-3, rtol=1e-3), \
        f"mismatch vs reference (max abs err {max_err})"

    print("KERNEL_OK")
</pallas_src>

<mosaic_0001>
module attributes {stable_mosaic.version = 11 : i64} {
  func.func @resblock_kernel(%arg0: i32, %arg1: memref<8x256xf32, #tpu.memory_space<vmem>>, %arg2: memref<8x72xf32, #tpu.memory_space<vmem>>, %arg3: memref<8x1xf32, #tpu.memory_space<vmem>>, %arg4: memref<8x72xf32, #tpu.memory_space<vmem>>, %arg5: memref<8x1xf32, #tpu.memory_space<vmem>>, %arg6: memref<9x256xf32, #tpu.memory_space<vmem>>, %arg7: memref<8x256xf32, #tpu.memory_space<vmem>>) attributes {dimension_semantics = [#tpu.dimension_semantics<parallel>], iteration_bounds = array<i64: 2>, scalar_prefetch = 0 : i64, scratch_operands = 0 : i64, tpu.core_type = #tpu.core_type<tc>, window_params = [{transform_indices = @transform_0, window_bounds = array<i64: 8, 256>}, {pipeline_mode = #tpu.pipeline_mode<synchronous>, transform_indices = @transform_1, window_bounds = array<i64: 8, 72>}, {pipeline_mode = #tpu.pipeline_mode<synchronous>, transform_indices = @transform_2, window_bounds = array<i64: 8, 1>}, {pipeline_mode = #tpu.pipeline_mode<synchronous>, transform_indices = @transform_3, window_bounds = array<i64: 8, 72>}, {pipeline_mode = #tpu.pipeline_mode<synchronous>, transform_indices = @transform_4, window_bounds = array<i64: 8, 1>}, {pipeline_mode = #tpu.pipeline_mode<synchronous>, transform_indices = @transform_5, window_bounds = array<i64: 9, 256>}, {transform_indices = @transform_6, window_bounds = array<i64: 8, 256>}]} {
    %c0 = arith.constant 0 : index
    %c0_0 = arith.constant 0 : index
    %0 = vector.load %arg1[%c0, %c0_0] : memref<8x256xf32, #tpu.memory_space<vmem>>, vector<8x256xf32>
    %c0_1 = arith.constant 0 : index
    %c0_2 = arith.constant 0 : index
    %1 = vector.load %arg6[%c0_1, %c0_2] : memref<9x256xf32, #tpu.memory_space<vmem>>, vector<9x256xf32>
    %c0_3 = arith.constant 0 : index
    %c0_4 = arith.constant 0 : index
    %2 = vector.load %arg2[%c0_3, %c0_4] : memref<8x72xf32, #tpu.memory_space<vmem>>, vector<8x72xf32>
    %c0_5 = arith.constant 0 : index
    %c0_6 = arith.constant 0 : index
    %3 = vector.load %arg3[%c0_5, %c0_6] : memref<8x1xf32, #tpu.memory_space<vmem>>, vector<8x1xf32>
    %c17_i32 = arith.constant 17 : i32
    %4 = tpu.dynamic_rotate %0 by %c17_i32 dim 1 : vector<8x256xf32>, i32 -> vector<8x256xf32>
    %5 = vector.extract_strided_slice %1 {offsets = [0, 0], sizes = [1, 256], strides = [1, 1]} : vector<9x256xf32> to vector<1x256xf32>
    %6 = vector.broadcast %5 : vector<1x256xf32> to vector<8x256xf32>
    %7 = arith.mulf %4, %6 : vector<8x256xf32>
    %c16_i32 = arith.constant 16 : i32
    %8 = tpu.dynamic_rotate %0 by %c16_i32 dim 1 : vector<8x256xf32>, i32 -> vector<8x256xf32>
    %9 = vector.extract_strided_slice %1 {offsets = [1, 0], sizes = [1, 256], strides = [1, 1]} : vector<9x256xf32> to vector<1x256xf32>
    %10 = vector.broadcast %9 : vector<1x256xf32> to vector<8x256xf32>
    %11 = arith.mulf %8, %10 : vector<8x256xf32>
    %c15_i32 = arith.constant 15 : i32
    %12 = tpu.dynamic_rotate %0 by %c15_i32 dim 1 : vector<8x256xf32>, i32 -> vector<8x256xf32>
    %13 = vector.extract_strided_slice %1 {offsets = [2, 0], sizes = [1, 256], strides = [1, 1]} : vector<9x256xf32> to vector<1x256xf32>
    %14 = vector.broadcast %13 : vector<1x256xf32> to vector<8x256xf32>
    %15 = arith.mulf %12, %14 : vector<8x256xf32>
    %c1_i32 = arith.constant 1 : i32
    %16 = tpu.dynamic_rotate %0 by %c1_i32 dim 1 : vector<8x256xf32>, i32 -> vector<8x256xf32>
    %17 = vector.extract_strided_slice %1 {offsets = [3, 0], sizes = [1, 256], strides = [1, 1]} : vector<9x256xf32> to vector<1x256xf32>
    %18 = vector.broadcast %17 : vector<1x256xf32> to vector<8x256xf32>
    %19 = arith.mulf %16, %18 : vector<8x256xf32>
    %c255_i32 = arith.constant 255 : i32
    %20 = tpu.dynamic_rotate %0 by %c255_i32 dim 1 : vector<8x256xf32>, i32 -> vector<8x256xf32>
    %21 = vector.extract_strided_slice %1 {offsets = [5, 0], sizes = [1, 256], strides = [1, 1]} : vector<9x256xf32> to vector<1x256xf32>
    %22 = vector.broadcast %21 : vector<1x256xf32> to vector<8x256xf32>
    %23 = arith.mulf %20, %22 : vector<8x256xf32>
    %c241_i32 = arith.constant 241 : i32
    %24 = tpu.dynamic_rotate %0 by %c241_i32 dim 1 : vector<8x256xf32>, i32 -> vector<8x256xf32>
    %25 = vector.extract_strided_slice %1 {offsets = [6, 0], sizes = [1, 256], strides = [1, 1]} : vector<9x256xf32> to vector<1x256xf32>
    %26 = vector.broadcast %25 : vector<1x256xf32> to vector<8x256xf32>
    %27 = arith.mulf %24, %26 : vector<8x256xf32>
    %c240_i32 = arith.constant 240 : i32
    %28 = tpu.dynamic_rotate %0 by %c240_i32 dim 1 : vector<8x256xf32>, i32 -> vector<8x256xf32>
    %29 = vector.extract_strided_slice %1 {offsets = [7, 0], sizes = [1, 256], strides = [1, 1]} : vector<9x256xf32> to vector<1x256xf32>
    %30 = vector.broadcast %29 : vector<1x256xf32> to vector<8x256xf32>
    %31 = arith.mulf %28, %30 : vector<8x256xf32>
    %c239_i32 = arith.constant 239 : i32
    %32 = tpu.dynamic_rotate %0 by %c239_i32 dim 1 : vector<8x256xf32>, i32 -> vector<8x256xf32>
    %33 = vector.extract_strided_slice %1 {offsets = [8, 0], sizes = [1, 256], strides = [1, 1]} : vector<9x256xf32> to vector<1x256xf32>
    %34 = vector.broadcast %33 : vector<1x256xf32> to vector<8x256xf32>
    %35 = arith.mulf %32, %34 : vector<8x256xf32>
    %36 = tpu.concatenate %7, %11, %15, %19, %0, %23, %27, %31, %35 in 0 : vector<8x256xf32>, vector<8x256xf32>, vector<8x256xf32>, vector<8x256xf32>, vector<8x256xf32>, vector<8x256xf32>, vector<8x256xf32>, vector<8x256xf32>, vector<8x256xf32> -> vector<72x256xf32>
    %cst = arith.constant dense<0.000000e+00> : vector<8x256xf32>
    %37 = tpu.matmul %2, %36, %cst {dimension_numbers = #tpu.dot_dimension_numbers<[1], [0], [0], [1], [0, 0, 1, 1], [], []>} : vector<8x72xf32>, vector<72x256xf32>, vector<8x256xf32> -> vector<8x256xf32>
    %38 = vector.broadcast %3 : vector<8x1xf32> to vector<8x256xf32>
    %39 = arith.addf %37, %38 : vector<8x256xf32>
    %cst_7 = arith.constant 0.000000e+00 : f32
    %40 = vector.broadcast %cst_7 : f32 to vector<8x256xf32>
    %41 = arith.maximumf %39, %40 : vector<8x256xf32>
    %c0_8 = arith.constant 0 : index
    %c0_9 = arith.constant 0 : index
    %42 = vector.load %arg4[%c0_8, %c0_9] : memref<8x72xf32, #tpu.memory_space<vmem>>, vector<8x72xf32>
    %c0_10 = arith.constant 0 : index
    %c0_11 = arith.constant 0 : index
    %43 = vector.load %arg5[%c0_10, %c0_11] : memref<8x1xf32, #tpu.memory_space<vmem>>, vector<8x1xf32>
    %c17_i32_12 = arith.constant 17 : i32
    %44 = tpu.dynamic_rotate %41 by %c17_i32_12 dim 1 : vector<8x256xf32>, i32 -> vector<8x256xf32>
    %45 = vector.extract_strided_slice %1 {offsets = [0, 0], sizes = [1, 256], strides = [1, 1]} : vector<9x256xf32> to vector<1x256xf32>
    %46 = vector.broadcast %45 : vector<1x256xf32> to vector<8x256xf32>
    %47 = arith.mulf %44, %46 : vector<8x256xf32>
    %c16_i32_13 = arith.constant 16 : i32
    %48 = tpu.dynamic_rotate %41 by %c16_i32_13 dim 1 : vector<8x256xf32>, i32 -> vector<8x256xf32>
    %49 = vector.extract_strided_slice %1 {offsets = [1, 0], sizes = [1, 256], strides = [1, 1]} : vector<9x256xf32> to vector<1x256xf32>
    %50 = vector.broadcast %49 : vector<1x256xf32> to vector<8x256xf32>
    %51 = arith.mulf %48, %50 : vector<8x256xf32>
    %c15_i32_14 = arith.constant 15 : i32
    %52 = tpu.dynamic_rotate %41 by %c15_i32_14 dim 1 : vector<8x256xf32>, i32 -> vector<8x256xf32>
    %53 = vector.extract_strided_slice %1 {offsets = [2, 0], sizes = [1, 256], strides = [1, 1]} : vector<9x256xf32> to vector<1x256xf32>
    %54 = vector.broadcast %53 : vector<1x256xf32> to vector<8x256xf32>
    %55 = arith.mulf %52, %54 : vector<8x256xf32>
    %c1_i32_15 = arith.constant 1 : i32
    %56 = tpu.dynamic_rotate %41 by %c1_i32_15 dim 1 : vector<8x256xf32>, i32 -> vector<8x256xf32>
    %57 = vector.extract_strided_slice %1 {offsets = [3, 0], sizes = [1, 256], strides = [1, 1]} : vector<9x256xf32> to vector<1x256xf32>
    %58 = vector.broadcast %57 : vector<1x256xf32> to vector<8x256xf32>
    %59 = arith.mulf %56, %58 : vector<8x256xf32>
    %c255_i32_16 = arith.constant 255 : i32
    %60 = tpu.dynamic_rotate %41 by %c255_i32_16 dim 1 : vector<8x256xf32>, i32 -> vector<8x256xf32>
    %61 = vector.extract_strided_slice %1 {offsets = [5, 0], sizes = [1, 256], strides = [1, 1]} : vector<9x256xf32> to vector<1x256xf32>
    %62 = vector.broadcast %61 : vector<1x256xf32> to vector<8x256xf32>
    %63 = arith.mulf %60, %62 : vector<8x256xf32>
    %c241_i32_17 = arith.constant 241 : i32
    %64 = tpu.dynamic_rotate %41 by %c241_i32_17 dim 1 : vector<8x256xf32>, i32 -> vector<8x256xf32>
    %65 = vector.extract_strided_slice %1 {offsets = [6, 0], sizes = [1, 256], strides = [1, 1]} : vector<9x256xf32> to vector<1x256xf32>
    %66 = vector.broadcast %65 : vector<1x256xf32> to vector<8x256xf32>
    %67 = arith.mulf %64, %66 : vector<8x256xf32>
    %c240_i32_18 = arith.constant 240 : i32
    %68 = tpu.dynamic_rotate %41 by %c240_i32_18 dim 1 : vector<8x256xf32>, i32 -> vector<8x256xf32>
    %69 = vector.extract_strided_slice %1 {offsets = [7, 0], sizes = [1, 256], strides = [1, 1]} : vector<9x256xf32> to vector<1x256xf32>
    %70 = vector.broadcast %69 : vector<1x256xf32> to vector<8x256xf32>
    %71 = arith.mulf %68, %70 : vector<8x256xf32>
    %c239_i32_19 = arith.constant 239 : i32
    %72 = tpu.dynamic_rotate %41 by %c239_i32_19 dim 1 : vector<8x256xf32>, i32 -> vector<8x256xf32>
    %73 = vector.extract_strided_slice %1 {offsets = [8, 0], sizes = [1, 256], strides = [1, 1]} : vector<9x256xf32> to vector<1x256xf32>
    %74 = vector.broadcast %73 : vector<1x256xf32> to vector<8x256xf32>
    %75 = arith.mulf %72, %74 : vector<8x256xf32>
    %76 = tpu.concatenate %47, %51, %55, %59, %41, %63, %67, %71, %75 in 0 : vector<8x256xf32>, vector<8x256xf32>, vector<8x256xf32>, vector<8x256xf32>, vector<8x256xf32>, vector<8x256xf32>, vector<8x256xf32>, vector<8x256xf32>, vector<8x256xf32> -> vector<72x256xf32>
    %cst_20 = arith.constant dense<0.000000e+00> : vector<8x256xf32>
    %77 = tpu.matmul %42, %76, %cst_20 {dimension_numbers = #tpu.dot_dimension_numbers<[1], [0], [0], [1], [0, 0, 1, 1], [], []>} : vector<8x72xf32>, vector<72x256xf32>, vector<8x256xf32> -> vector<8x256xf32>
    %78 = vector.broadcast %43 : vector<8x1xf32> to vector<8x256xf32>
    %79 = arith.addf %77, %78 : vector<8x256xf32>
    %80 = arith.addf %0, %79 : vector<8x256xf32>
    %c0_21 = arith.constant 0 : index
    %c0_22 = arith.constant 0 : index
    %81 = vector.load %arg7[%c0_21, %c0_22] : memref<8x256xf32, #tpu.memory_space<vmem>>, vector<8x256xf32>
    tpu.vector_store %arg7[%c0_21, %c0_22], %80 {strides = array<i32>} : memref<8x256xf32, #tpu.memory_space<vmem>>, vector<8x256xf32>,
    return
  }
  func.func @transform_0(%arg0: i32) -> (i32, i32) {
    %c0_i32 = arith.constant 0 : i32
    %c0_i32_0 = arith.constant 0 : i32
    return %c0_i32, %arg0 : i32, i32
  }
  func.func @transform_1(%arg0: i32) -> (i32, i32) {
    %c0_i32 = arith.constant 0 : i32
    %c0_i32_0 = arith.constant 0 : i32
    %c0_i32_1 = arith.constant 0 : i32
    return %c0_i32, %c0_i32_0 : i32, i32
  }
  func.func @transform_2(%arg0: i32) -> (i32, i32) {
    %c0_i32 = arith.constant 0 : i32
    %c0_i32_0 = arith.constant 0 : i32
    %c0_i32_1 = arith.constant 0 : i32
    return %c0_i32, %c0_i32_0 : i32, i32
  }
  func.func @transform_3(%arg0: i32) -> (i32, i32) {
    %c0_i32 = arith.constant 0 : i32
    %c0_i32_0 = arith.constant 0 : i32
    %c0_i32_1 = arith.constant 0 : i32
    return %c0_i32, %c0_i32_0 : i32, i32
  }
  func.func @transform_4(%arg0: i32) -> (i32, i32) {
    %c0_i32 = arith.constant 0 : i32
    %c0_i32_0 = arith.constant 0 : i32
    %c0_i32_1 = arith.constant 0 : i32
    return %c0_i32, %c0_i32_0 : i32, i32
  }
  func.func @transform_5(%arg0: i32) -> (i32, i32) {
    %c0_i32 = arith.constant 0 : i32
    %c0_i32_0 = arith.constant 0 : i32
    %c0_i32_1 = arith.constant 0 : i32
    return %c0_i32, %c0_i32_0 : i32, i32
  }
  func.func @transform_6(%arg0: i32) -> (i32, i32) {
    %c0_i32 = arith.constant 0 : i32
    %c0_i32_0 = arith.constant 0 : i32
    return %c0_i32, %arg0 : i32, i32
  }
}

</mosaic_0001>

<llo_original>
// kernel: tpu_custom_call.1
$region0: #{tpu_custom_call.1}
  #allocation0 [shape = 'u32[]', space=smem, size = 0x4, offset = 0x4, fixed_abs, tag = 'smem constant byte address 0x4 - core index']
  #allocation1 [shape = 'u32[144,128]{1,0:T(1,128)}', space=vmem, size = 0x12000, scoped, tag = 'internal scratch']
  %s0 = inlined_call_operand.hbm [shape: f32[8,512], index: 0, kind: input, shape index: {}]
  %s1 = inlined_call_operand.vmem [shape: f32[8,72], index: 1, kind: input, shape index: {}]
  %s2 = inlined_call_operand.vmem [shape: f32[8,1], index: 2, kind: input, shape index: {}]
  %s3 = inlined_call_operand.vmem [shape: f32[8,72], index: 3, kind: input, shape index: {}]
  %s4 = inlined_call_operand.vmem [shape: f32[8,1], index: 4, kind: input, shape index: {}]
  %s5 = inlined_call_operand.hbm [shape: f32[9,256], index: 5, kind: input, shape index: {}]
  %s6 = inlined_call_operand.hbm [shape: f32[8,512], index: 6, kind: output, shape index: {}]
  %s7 = sld [smem:[#allocation0]]
  $region65: #{tpu_custom_call.1} parent=0
    _
  %s9 = ssub.s32 1, %s7
  %s10 = scalar_select 0, %s9, %s7
  $region1: #{tpu_custom_call.1} parent=0
    #allocation2 [shape = 'u8[16384]{0}', space=vmem, size = 0x4000, scoped, tag = 'input window, operand 0']
    #allocation3 [shape = 's32[2]{0}', space=sflag, size = 0x8, scoped, tag = 'scoped memory for tpu_custom_call.1']
    #allocation4 [shape = 's32[2]{0}', space=sflag, size = 0x8, scoped, tag = 'scoped memory for tpu_custom_call.1']
    #allocation5 [shape = 'u8[16384]{0}', space=vmem, size = 0x4000, scoped, tag = 'input window, operand 5, single buffered']
    #allocation6 [shape = 's32[1]{0}', space=sflag, size = 0x4, scoped, tag = 'scoped memory for tpu_custom_call.1']
    #allocation7 [shape = 'u8[16384]{0}', space=vmem, size = 0x4000, scoped, tag = 'output window, operand 0']
    %11 = vsyncpa [#allocation3], 0
    %s12 = scalar_lea.sflag [#allocation3], 1
    %13 = vsyncpa %s12, 0
    %14 = vsyncpa [#allocation6], 0
    %15 = vsyncpa [#allocation4], 0
    %s16 = scalar_lea.sflag [#allocation4], 1
    %17 = vsyncpa %s16, 0
    loop: start=0, step=1, limit=4
    $region2: #{tpu_custom_call.1} parent=1 // loop_pre_header
      _
    $region3: #{tpu_custom_call.1} parent=1 // loop_header
      %s19 = sphi 0, %s23
      %p20 = scmp.ge.s32.totalorder %s19, 4
      %s29 = sphi 0, %s31
      %s32 = sphi 0, %s29
      %s33 = sphi 0, %s32
      %s49 = sphi 0, %s33
      %s53 = sphi 0, %s53
      %s55 = sphi 0, %s53
      %s56 = sphi 0, %s55
      %s70 = sphi 0, %s56
      %s74 = sphi 0, %s74
      %s76 = sphi 0, %s74
      %s77 = sphi 0, %s76
      %s91 = sphi 0, %s77
      %s95 = sphi 0, %s95
      %s97 = sphi 0, %s95
      %s98 = sphi 0, %s97
      %s112 = sphi 0, %s98
      %s116 = sphi 0, %s116
      %s118 = sphi 0, %s116
      %s119 = sphi 0, %s118
      %s133 = sphi 0, %s119
      %s137 = sphi 0, %s137
      %s139 = sphi 0, %s137
      %s140 = sphi 0, %s139
      %s154 = sphi 0, %s140
      %s160 = sphi 0, %s162
      %s163 = sphi 0, %s160
      %s164 = sphi 0, %s163
      %s180 = sphi 0, %s164
    $region4: #{tpu_custom_call.1} parent=1 // loop_header_branch
      %22 = sbr.rel (%p20) target = $region8
    $region5: #{tpu_custom_call.1} parent=1 // loop_body
      %s24 = ssub.s32 %s19, 1
      %s25 = ssub.s32 %s19, 2
      %s26 = sadd.s32 %s19, 1
      %s27 = ssub.s32 %s19, %s26
      %p28 = scmp.eq.s32.totalorder %s27, 0
      %s30 = sadd.s32 %s29, 1
      %s31 = scalar_select %p28, %s29, %s30
      %p34 = pneg %p28
      %p35 = scmp.eq.s32.totalorder %s19, 1
      %p36 = por %p34, %p35
      %p37 = scmp.ne.s32.totalorder %s29, %s32
      %p38 = scmp.eq.s32.totalorder %s19, 0
      %p39 = por %p37, %p38
      %p40 = scmp.ne.s32.totalorder %s29, %s32
      %p41 = scmp.eq.s32.totalorder %s24, 1
      %p42 = por %p40, %p41
      %p43 = scmp.ne.s32.totalorder %s32, %s33
      %p44 = scmp.eq.s32.totalorder %s24, 0
      %p45 = por %p43, %p44
      %p46 = scmp.ne.s32.totalorder %s32, %s33
      %p47 = scmp.eq.s32.totalorder %s25, 1
      %p48 = por %p46, %p47
      %p50 = scmp.ne.s32.totalorder %s33, %s49
      %p51 = scmp.eq.s32.totalorder %s25, 0
      %p52 = por %p50, %p51
      %s54 = sadd.s32 %s53, 1
      %p57 = scmp.eq.s32.totalorder %s19, 1
      %p58 = scmp.ne.s32.totalorder %s53, %s55
      %p59 = scmp.eq.s32.totalorder %s19, 0
      %p60 = por %p58, %p59
      %p61 = scmp.ne.s32.totalorder %s53, %s55
      %p62 = scmp.eq.s32.totalorder %s24, 1
      %p63 = por %p61, %p62
      %p64 = scmp.ne.s32.totalorder %s55, %s56
      %p65 = scmp.eq.s32.totalorder %s24, 0
      %p66 = por %p64, %p65
      %p67 = scmp.ne.s32.totalorder %s55, %s56
      %p68 = scmp.eq.s32.totalorder %s25, 1
      %p69 = por %p67, %p68
      %p71 = scmp.ne.s32.totalorder %s56, %s70
      %p72 = scmp.eq.s32.totalorder %s25, 0
      %p73 = por %p71, %p72
      %s75 = sadd.s32 %s74, 1
      %p78 = scmp.eq.s32.totalorder %s19, 1
      %p79 = scmp.ne.s32.totalorder %s74, %s76
      %p80 = scmp.eq.s32.totalorder %s19, 0
      %p81 = por %p79, %p80
      %p82 = scmp.ne.s32.totalorder %s74, %s76
      %p83 = scmp.eq.s32.totalorder %s24, 1
      %p84 = por %p82, %p83
      %p85 = scmp.ne.s32.totalorder %s76, %s77
      %p86 = scmp.eq.s32.totalorder %s24, 0
      %p87 = por %p85, %p86
      %p88 = scmp.ne.s32.totalorder %s76, %s77
      %p89 = scmp.eq.s32.totalorder %s25, 1
      %p90 = por %p88, %p89
      %p92 = scmp.ne.s32.totalorder %s77, %s91
      %p93 = scmp.eq.s32.totalorder %s25, 0
      %p94 = por %p92, %p93
      %s96 = sadd.s32 %s95, 1
      %p99 = scmp.eq.s32.totalorder %s19, 1
      %p100 = scmp.ne.s32.totalorder %s95, %s97
      %p101 = scmp.eq.s32.totalorder %s19, 0
      %p102 = por %p100, %p101
      %p103 = scmp.ne.s32.totalorder %s95, %s97
      %p104 = scmp.eq.s32.totalorder %s24, 1
      %p105 = por %p103, %p104
      %p106 = scmp.ne.s32.totalorder %s97, %s98
      %p107 = scmp.eq.s32.totalorder %s24, 0
      %p108 = por %p106, %p107
      %p109 = scmp.ne.s32.totalorder %s97, %s98
      %p110 = scmp.eq.s32.totalorder %s25, 1
      %p111 = por %p109, %p110
      %p113 = scmp.ne.s32.totalorder %s98, %s112
      %p114 = scmp.eq.s32.totalorder %s25, 0
      %p115 = por %p113, %p114
      %s117 = sadd.s32 %s116, 1
      %p120 = scmp.eq.s32.totalorder %s19, 1
      %p121 = scmp.ne.s32.totalorder %s116, %s118
      %p122 = scmp.eq.s32.totalorder %s19, 0
      %p123 = por %p121, %p122
      %p124 = scmp.ne.s32.totalorder %s116, %s118
      %p125 = scmp.eq.s32.totalorder %s24, 1
      %p126 = por %p124, %p125
      %p127 = scmp.ne.s32.totalorder %s118, %s119
      %p128 = scmp.eq.s32.totalorder %s24, 0
      %p129 = por %p127, %p128
      %p130 = scmp.ne.s32.totalorder %s118, %s119
      %p131 = scmp.eq.s32.totalorder %s25, 1
      %p132 = por %p130, %p131
      %p134 = scmp.ne.s32.totalorder %s119, %s133
      %p135 = scmp.eq.s32.totalorder %s25, 0
      %p136 = por %p134, %p135
      %s138 = sadd.s32 %s137, 1
      %p141 = scmp.eq.s32.totalorder %s19, 1
      %p142 = scmp.ne.s32.totalorder %s137, %s139
      %p143 = scmp.eq.s32.totalorder %s19, 0
      %p144 = por %p142, %p143
      %p145 = scmp.ne.s32.totalorder %s137, %s139
      %p146 = scmp.eq.s32.totalorder %s24, 1
      %p147 = por %p145, %p146
      %p148 = scmp.ne.s32.totalorder %s139, %s140
      %p149 = scmp.eq.s32.totalorder %s24, 0
      %p150 = por %p148, %p149
      %p151 = scmp.ne.s32.totalorder %s139, %s140
      %p152 = scmp.eq.s32.totalorder %s25, 1
      %p153 = por %p151, %p152
      %p155 = scmp.ne.s32.totalorder %s140, %s154
      %p156 = scmp.eq.s32.totalorder %s25, 0
      %p157 = por %p155, %p156
      %s158 = ssub.s32 %s19, %s26
      %p159 = scmp.eq.s32.totalorder %s158, 0
      %s161 = sadd.s32 %s160, 1
      %s162 = scalar_select %p159, %s160, %s161
      %p165 = pneg %p159
      %p166 = scmp.eq.s32.totalorder %s19, 1
      %p167 = por %p165, %p166
      %p168 = scmp.ne.s32.totalorder %s160, %s163
      %p169 = scmp.eq.s32.totalorder %s19, 0
      %p170 = por %p168, %p169
      %p171 = scmp.ne.s32.totalorder %s160, %s163
      %p172 = scmp.eq.s32.totalorder %s24, 1
      %p173 = por %p171, %p172
      %p174 = scmp.ne.s32.totalorder %s163, %s164
      %p175 = scmp.eq.s32.totalorder %s24, 0
      %p176 = por %p174, %p175
      %p177 = scmp.ne.s32.totalorder %s163, %s164
      %p178 = scmp.eq.s32.totalorder %s25, 1
      %p179 = por %p177, %p178
      %p181 = scmp.ne.s32.totalorder %s164, %s180
      %p182 = scmp.eq.s32.totalorder %s25, 0
      %p183 = por %p181, %p182
      %p184 = scmp.le.s32.totalorder 1, %s19
      %p185 = scmp.lt.s32.totalorder %s19, 3
      %p186 = pnand %p184, %p185
      %p187 = pneg %p186
      // Predicated region
      $region9: #{tpu_custom_call.1} parent=5 // pred_check
        _
      $region10: #{tpu_custom_call.1} parent=5 // pred_check_branch
        %189 = sbr.rel (%p186) target = $region12
      $region11: #{tpu_custom_call.1} parent=5 // pred_region
        %s190 = ssub.s32 %s19, 1
        // Predicated region
        $region13: #{tpu_custom_call.1} parent=11 // pred_check
          %p191 = pneg %p66
        $region14: #{tpu_custom_call.1} parent=11 // pred_check_branch
          %193 = sbr.rel (%p191) target = $region16
        $region15: #{tpu_custom_call.1} parent=11 // pred_region
          _
        $region16: #{tpu_custom_call.1} parent=11 // pred_fallthru
          _
        // Predicated region
        $region17: #{tpu_custom_call.1} parent=11 // pred_check
          %p194 = pneg %p87
        $region18: #{tpu_custom_call.1} parent=11 // pred_check_branch
          %196 = sbr.rel (%p194) target = $region20
        $region19: #{tpu_custom_call.1} parent=11 // pred_region
          _
        $region20: #{tpu_custom_call.1} parent=11 // pred_fallthru
          _
        // Predicated region
        $region21: #{tpu_custom_call.1} parent=11 // pred_check
          %p197 = pneg %p108
        $region22: #{tpu_custom_call.1} parent=11 // pred_check_branch
          %199 = sbr.rel (%p197) target = $region24
        $region23: #{tpu_custom_call.1} parent=11 // pred_region
          _
        $region24: #{tpu_custom_call.1} parent=11 // pred_fallthru
          _
        // Predicated region
        $region25: #{tpu_custom_call.1} parent=11 // pred_check
          %p200 = pneg %p129
        $region26: #{tpu_custom_call.1} parent=11 // pred_check_branch
          %202 = sbr.rel (%p200) target = $region28
        $region27: #{tpu_custom_call.1} parent=11 // pred_region
          _
        $region28: #{tpu_custom_call.1} parent=11 // pred_fallthru
          _
        // Predicated region
        $region29: #{tpu_custom_call.1} parent=11 // pred_check
          %p203 = pneg %p150
        $region30: #{tpu_custom_call.1} parent=11 // pred_check_branch
          %205 = sbr.rel (%p203) target = $region32
        $region31: #{tpu_custom_call.1} parent=11 // pred_region
          %s207 = ssub.s32 512, 512
          %208 = vsyncadd [#allocation6], %s207
          %s209 = sshll.u32 [#allocation5], 4
          %s210 = int_to_ptr.vmem [resolvable:$true] %s209
          %215 = dma.hbm_to_vmem [thread:$0]  %s5, 512, %s210, [#allocation6], 256, 256, 16
        $region32: #{tpu_custom_call.1} parent=11 // pred_fallthru
          _
      $region12: #{tpu_custom_call.1} parent=5 // pred_fallthru
        _
      %p216 = scmp.lt.s32.totalorder %s19, 2
      // Predicated region
      $region33: #{tpu_custom_call.1} parent=5 // pred_check
        %p217 = pneg %p216
      $region34: #{tpu_custom_call.1} parent=5 // pred_check_branch
        %219 = sbr.rel (%p217) target = $region36
      $region35: #{tpu_custom_call.1} parent=5 // pred_region
        // Predicated region
        $region37: #{tpu_custom_call.1} parent=35 // pred_check
          %p220 = pneg %p39
        $region38: #{tpu_custom_call.1} parent=35 // pred_check_branch
          %222 = sbr.rel (%p220) target = $region40
        $region39: #{tpu_custom_call.1} parent=35 // pred_region
          %s223 = sand.u32 %s29, 1
          %s224 = scalar_lea.sflag [#allocation3], %s223
          %s225 = sand.u32 %s29, 1
          %s226 = smul.addr %s225, 16
          %s227 = scalar_lea.vmem [#allocation2], %s226
          %s228 = smul.u32 2, %s19
          %s230 = ssub.s32 256, 256
          %231 = vsyncadd %s224, %s230
          %s232 = smul.addr %s228, 128
          %s233 = scalar_lea.hbm %s0, %s232
          %s235 = sshll.u32 %s227, 4
          %s236 = int_to_ptr.vmem [resolvable:$true] %s235
          %238 = dma.hbm_to_vmem [thread:$0]  %s233, 256, %s236, %s224
        $region40: #{tpu_custom_call.1} parent=35 // pred_fallthru
          _
      $region36: #{tpu_custom_call.1} parent=5 // pred_fallthru
        _
      %p239 = scmp.le.s32.totalorder 1, %s19
      %p240 = scmp.lt.s32.totalorder %s19, 3
      %p241 = pnand %p239, %p240
      %p242 = pneg %p241
      // Predicated region
      $region41: #{tpu_custom_call.1} parent=5 // pred_check
        _
      $region42: #{tpu_custom_call.1} parent=5 // pred_check_branch
        %244 = sbr.rel (%p241) target = $region44
      $region43: #{tpu_custom_call.1} parent=5 // pred_region
        %s245 = ssub.s32 %s19, 1
        %s246 = sand.u32 %s32, 1
        %s247 = scalar_lea.sflag [#allocation3], %s246
        %s248 = sand.u32 %s32, 1
        %s249 = smul.addr %s248, 16
        %s250 = scalar_lea.vmem [#allocation2], %s249
        // Predicated region
        $region45: #{tpu_custom_call.1} parent=43 // pred_check
          %p251 = pneg %p45
        $region46: #{tpu_custom_call.1} parent=43 // pred_check_branch
          %253 = sbr.rel (%p251) target = $region48
        $region47: #{tpu_custom_call.1} parent=43 // pred_region
          %254 = dma.done %s247, 256
        $region48: #{tpu_custom_call.1} parent=43 // pred_fallthru
          _
        // Predicated region
        $region49: #{tpu_custom_call.1} parent=43 // pred_check
          %p255 = pneg %p150
        $region50: #{tpu_custom_call.1} parent=43 // pred_check_branch
          %257 = sbr.rel (%p255) target = $region52
        $region51: #{tpu_custom_call.1} parent=43 // pred_region
          %258 = dma.done [#allocation6], 512
        $region52: #{tpu_custom_call.1} parent=43 // pred_fallthru
          _
        %s259 = sand.u32 %s32, 1
        %s260 = scalar_lea.sflag [#allocation3], %s259
        %s261 = sand.u32 %s32, 1
        %s262 = smul.addr %s261, 16
        %s263 = scalar_lea.vmem [#allocation2], %s262
        %p264 = pneg %p45
        %p265 = pneg %p42
        %p266 = pneg %p66
        %p267 = pneg %p63
        %p268 = pneg %p87
        %p269 = pneg %p84
        %p270 = pneg %p108
        %p271 = pneg %p105
        %p272 = pneg %p129
        %p273 = pneg %p126
        %p274 = pneg %p150
        %p275 = pneg %p147
        %p276 = pneg %p176
        %p277 = pneg %p173
        %s278 = sand.u32 %s163, 1
        %s279 = scalar_lea.sflag [#allocation4], %s278
        %s280 = sand.u32 %s163, 1
        %s281 = smul.addr %s280, 16
        %s282 = scalar_lea.vmem [#allocation7], %s281
        %s283 = smul.u32 2, %s24
        %s284 = smul.u32 2, %s24
        %v285 = vld [vmem:[%s250] sm:$0xff]
        %v286 = vld [vmem:[%s250 + $0x8] sm:$0xff]
        %v287 = vld [vmem:[#allocation5] sm:$0xff]
        %v288 = vld [vmem:[#allocation5 + $0x8] sm:$0xff]
        %v289 = vld [vmem:[#allocation5 + $0x10] sm:$0x1]
        %v290 = vld [vmem:[#allocation5 + $0x18] sm:$0x1]
        %v291 = vld [vmem:[%s1] sm:$0xff]
        %v292 = vld [vmem:[%s2] sm:$0xff]
        %293 = vrot.lane.b32.xlu0 %v285, 17
        %v294 = vpop.permute.xlu0 %293
        %295 = vrot.lane.b32.xlu0 %v286, 17
        %v296 = vpop.permute.xlu0 %295
        %v297 = vlaneseq
        %v298 = vand.u32 %v297, 127
        %vm299 = vcmp.lt.s32.totalorder %v298, 17
        %v300 = vsel %vm299, %v294, %v296
        %v301 = vsel %vm299, %v296, %v294
        %v302 = vlaneseq
        %v303 = vshrl.u32 %v302, 7
        %v304 = vsub.s32 0, %v303
        %v305 = vrot.slane %v287, %v304
        %v306 = vlaneseq
        %v307 = vshrl.u32 %v306, 7
        %v308 = vsub.s32 0, %v307
        %v309 = vrot.slane %v288, %v308
        %v310 = vmul.f32 %v301, %v305
        %v311 = vmul.f32 %v300, %v309
        %312 = vrot.lane.b32.xlu0 %v285, 16
        %v313 = vpop.permute.xlu0 %312
        %314 = vrot.lane.b32.xlu0 %v286, 16
        %v315 = vpop.permute.xlu0 %314
        %vm316 = vcmp.lt.s32.totalorder %v298, 16
        %v317 = vsel %vm316, %v313, %v315
        %v318 = vsel %vm316, %v315, %v313
        %v319 = vlaneseq
        %v320 = vshrl.u32 %v319, 7
        %v321 = vsub.s32 1, %v320
        %v322 = vrot.slane %v287, %v321
        %v323 = vlaneseq
        %v324 = vshrl.u32 %v323, 7
        %v325 = vsub.s32 1, %v324
        %v326 = vrot.slane %v288, %v325
        %v327 = vmul.f32 %v318, %v322
        %v328 = vmul.f32 %v317, %v326
        %329 = vrot.lane.b32.xlu0 %v285, 15
        %v330 = vpop.permute.xlu0 %329
        %331 = vrot.lane.b32.xlu0 %v286, 15
        %v332 = vpop.permute.xlu0 %331
        %vm333 = vcmp.lt.s32.totalorder %v298, 15
        %v334 = vsel %vm333, %v330, %v332
        %v335 = vsel %vm333, %v332, %v330
        %v336 = vlaneseq
        %v337 = vshrl.u32 %v336, 7
        %v338 = vsub.s32 2, %v337
        %v339 = vrot.slane %v287, %v338
        %v340 = vlaneseq
        %v341 = vshrl.u32 %v340, 7
        %v342 = vsub.s32 2, %v341
        %v343 = vrot.slane %v288, %v342
        %v344 = vmul.f32 %v335, %v339
        %v345 = vmul.f32 %v334, %v343
        %346 = vrot.lane.b32.xlu0 %v285, 1
        %v347 = vpop.permute.xlu0 %346
        %348 = vrot.lane.b32.xlu0 %v286, 1
        %v349 = vpop.permute.xlu0 %348
        %vm350 = vcmp.lt.s32.totalorder %v298, 1
        %v351 = vsel %vm350, %v347, %v349
        %v352 = vsel %vm350, %v349, %v347
        %v353 = vlaneseq
        %v354 = vshrl.u32 %v353, 7
        %v355 = vsub.s32 3, %v354
        %v356 = vrot.slane %v287, %v355
        %v357 = vlaneseq
        %v358 = vshrl.u32 %v357, 7
        %v359 = vsub.s32 3, %v358
        %v360 = vrot.slane %v288, %v359
        %v361 = vmul.f32 %v352, %v356
        %v362 = vmul.f32 %v351, %v360
        %363 = vrot.lane.b32.xlu0 %v285, 127
        %v364 = vpop.permute.xlu0 %363
        %365 = vrot.lane.b32.xlu0 %v286, 127
        %v366 = vpop.permute.xlu0 %365
        %vm367 = vcmp.lt.s32.totalorder %v298, 127
        %v368 = vsel %vm367, %v364, %v366
        %v369 = vsel %vm367, %v366, %v364
        %v370 = vlaneseq
        %v371 = vshrl.u32 %v370, 7
        %v372 = vsub.s32 5, %v371
        %v373 = vrot.slane %v287, %v372
        %v374 = vlaneseq
        %v375 = vshrl.u32 %v374, 7
        %v376 = vsub.s32 5, %v375
        %v377 = vrot.slane %v288, %v376
        %v378 = vmul.f32 %v368, %v373
        %v379 = vmul.f32 %v369, %v377
        %380 = vrot.lane.b32.xlu0 %v285, 113
        %v381 = vpop.permute.xlu0 %380
        %382 = vrot.lane.b32.xlu0 %v286, 113
        %v383 = vpop.permute.xlu0 %382
        %vm384 = vcmp.lt.s32.totalorder %v298, 113
        %v385 = vsel %vm384, %v381, %v383
        %v386 = vsel %vm384, %v383, %v381
        %v387 = vlaneseq
        %v388 = vshrl.u32 %v387, 7
        %v389 = vsub.s32 6, %v388
        %v390 = vrot.slane %v287, %v389
        %v391 = vlaneseq
        %v392 = vshrl.u32 %v391, 7
        %v393 = vsub.s32 6, %v392
        %v394 = vrot.slane %v288, %v393
        %v395 = vmul.f32 %v385, %v390
        %v396 = vmul.f32 %v386, %v394
        %397 = vrot.lane.b32.xlu0 %v285, 112
        %v398 = vpop.permute.xlu0 %397
        %399 = vrot.lane.b32.xlu0 %v286, 112
        %v400 = vpop.permute.xlu0 %399
        %vm401 = vcmp.lt.s32.totalorder %v298, 112
        %v402 = vsel %vm401, %v398, %v400
        %v403 = vsel %vm401, %v400, %v398
        %v404 = vlaneseq
        %v405 = vshrl.u32 %v404, 7
        %v406 = vsub.s32 7, %v405
        %v407 = vrot.slane %v287, %v406
        %v408 = vlaneseq
        %v409 = vshrl.u32 %v408, 7
        %v410 = vsub.s32 7, %v409
        %v411 = vrot.slane %v288, %v410
        %v412 = vmul.f32 %v402, %v407
        %v413 = vmul.f32 %v403, %v411
        %414 = vrot.lane.b32.xlu0 %v285, 111
        %v415 = vpop.permute.xlu0 %414
        %416 = vrot.lane.b32.xlu0 %v286, 111
        %v417 = vpop.permute.xlu0 %416
        %vm418 = vcmp.lt.s32.totalorder %v298, 111
        %v419 = vsel %vm418, %v415, %v417
        %v420 = vsel %vm418, %v417, %v415
        %v421 = vlaneseq
        %v422 = vshrl.u32 %v421, 7
        %v423 = vsub.s32 0, %v422
        %v424 = vrot.slane %v289, %v423
        %v425 = vlaneseq
        %v426 = vshrl.u32 %v425, 7
        %v427 = vsub.s32 0, %v426
        %v428 = vrot.slane %v290, %v427
        %v429 = vmul.f32 %v419, %v424
        %v430 = vmul.f32 %v420, %v428
        %432 = vset.pattern.permute.xlu0 0
        %433 = vperm.xlu0 %432, %v292
        %v434 = vpop.permute.xlu0 %433
        %vm436 = vcmask 588800
        %v438 = vsel %vm436, %v291, 0
        %440 = vmatprep.subr.mxu0 0.0
        %441 = vmatpush1.msra.mxu0 0.0
        %442 = vmatprep.subr.mxu0 0.0
        %443 = vmatpush1.msra.mxu0 0.0
        %444 = vmatprep.subr.mxu0 0.0
        %445 = vmatpush1.msra.mxu0 0.0
        %446 = vmatprep.subr.mxu0 0.0
        %447 = vmatpush1.msra.mxu0 0.0
        %448 = vmatprep.subr.mxu0 0.0
        %449 = vmatpush1.msra.mxu0 0.0
        %450 = vmatprep.subr.mxu0 0.0
        %451 = vmatpush1.msra.mxu0 0.0
        %452 = vmatprep.subr.mxu0 0.0
        %453 = vmatpush1.msra.mxu0 0.0
        %454 = vmatprep.subr.mxu0 %v430
        %455 = vmatpush1.msra.mxu0 %v429
        %456 = vmatprep.subr.mxu0 %v413
        %457 = vmatpush1.msra.mxu0 %v412
        %458 = vmatprep.subr.mxu0 %v396
        %459 = vmatpush1.msra.mxu0 %v395
        %460 = vmatprep.subr.mxu0 %v379
        %461 = vmatpush1.msra.mxu0 %v378
        %462 = vmatprep.subr.mxu0 %v286
        %463 = vmatpush1.msra.mxu0 %v285
        %464 = vmatprep.subr.mxu0 %v362
        %465 = vmatpush1.msra.mxu0 %v361
        %466 = vmatprep.subr.mxu0 %v345
        %467 = vmatpush1.msra.mxu0 %v344
        %468 = vmatprep.subr.mxu0 %v328
        %469 = vmatpush1.msra.mxu0 %v327
        %470 = vmatprep.subr.mxu0 %v311
        %471 = vmatpush1.msra.mxu0 %v310
        %472 = vmatprep.subr.mxu0 0.0
        %473 = vmatpush2.msra.mxu0 0.0
        %474 = vmatprep.subr.mxu0 0.0
        %475 = vmatpush2.msra.mxu0 0.0
        %476 = vmatprep.subr.mxu0 0.0
        %477 = vmatpush2.msra.mxu0 0.0
        %478 = vmatprep.subr.mxu0 0.0
        %479 = vmatpush2.msra.mxu0 0.0
        %480 = vmatprep.subr.mxu0 0.0
        %481 = vmatpush2.msra.mxu0 0.0
        %482 = vmatprep.subr.mxu0 0.0
        %483 = vmatpush2.msra.mxu0 0.0
        %484 = vmatprep.subr.mxu0 0.0
        %485 = vmatpush2.msra.mxu0 0.0
        %486 = vmatprep.subr.mxu0 0.0
        %487 = vmatpush2.msra.mxu0 0.0
        %488 = vmatprep.subr.mxu0 0.0
        %489 = vmatpush2.msra.mxu0 0.0
        %490 = vmatprep.subr.mxu0 0.0
        %491 = vmatpush2.msra.mxu0 0.0
        %492 = vmatprep.subr.mxu0 0.0
        %493 = vmatpush2.msra.mxu0 0.0
        %494 = vmatprep.subr.mxu0 0.0
        %495 = vmatpush2.msra.mxu0 0.0
        %496 = vmatprep.subr.mxu0 0.0
        %497 = vmatpush2.msra.mxu0 0.0
        %498 = vmatprep.subr.mxu0 0.0
        %499 = vmatpush2.msra.mxu0 0.0
        %500 = vmatprep.subr.mxu0 0.0
        %501 = vmatpush2.msra.mxu0 0.0
        %502 = vmatprep.subr.mxu0 0.0
        %503 = vmatpush2.msra.mxu0 0.0
        %504 = vmatprep.mubr.f32.mxu0 0.0
        %505 = vmatmul.mubr.f32.gmra.mxu0 %v438
        %v506 = vpop.f32.mrf.mxu0
        %v507 = vadd.f32 %v434, %v506
        %v508 = vpop.f32.mrf.mxu0
        %v509 = vadd.f32 %v434, %v508
        %510 = vdwg.mxu0
        %v511 = vmax.f32 %v507, 0.0
        %v512 = vmax.f32 %v509, 0.0
        %v513 = vld [vmem:[%s3] sm:$0xff]
        %v514 = vld [vmem:[%s4] sm:$0xff]
        %515 = vrot.lane.b32.xlu0 %v511, 17
        %v516 = vpop.permute.xlu0 %515
        %517 = vrot.lane.b32.xlu0 %v512, 17
        %v518 = vpop.permute.xlu0 %517
        %v519 = vsel %vm299, %v516, %v518
        %v520 = vsel %vm299, %v518, %v516
        %v521 = vmul.f32 %v520, %v305
        %v522 = vmul.f32 %v519, %v309
        %523 = vrot.lane.b32.xlu0 %v511, 16
        %v524 = vpop.permute.xlu0 %523
        %525 = vrot.lane.b32.xlu0 %v512, 16
        %v526 = vpop.permute.xlu0 %525
        %v527 = vsel %vm316, %v524, %v526
        %v528 = vsel %vm316, %v526, %v524
        %v529 = vmul.f32 %v528, %v322
        %v530 = vmul.f32 %v527, %v326
        %531 = vrot.lane.b32.xlu0 %v511, 15
        %v532 = vpop.permute.xlu0 %531
        %533 = vrot.lane.b32.xlu0 %v512, 15
        %v534 = vpop.permute.xlu0 %533
        %v535 = vsel %vm333, %v532, %v534
        %v536 = vsel %vm333, %v534, %v532
        %v537 = vmul.f32 %v536, %v339
        %v538 = vmul.f32 %v535, %v343
        %539 = vrot.lane.b32.xlu0 %v511, 1
        %v540 = vpop.permute.xlu0 %539
        %541 = vrot.lane.b32.xlu0 %v512, 1
        %v542 = vpop.permute.xlu0 %541
        %v543 = vsel %vm350, %v540, %v542
        %v544 = vsel %vm350, %v542, %v540
        %v545 = vmul.f32 %v544, %v356
        %v546 = vmul.f32 %v543, %v360
        %547 = vrot.lane.b32.xlu0 %v511, 127
        %v548 = vpop.permute.xlu0 %547
        %549 = vrot.lane.b32.xlu0 %v512, 127
        %v550 = vpop.permute.xlu0 %549
        %v551 = vsel %vm367, %v548, %v550
        %v552 = vsel %vm367, %v550, %v548
        %v553 = vmul.f32 %v551, %v373
        %v554 = vmul.f32 %v552, %v377
        %555 = vrot.lane.b32.xlu0 %v511, 113
        %v556 = vpop.permute.xlu0 %555
        %557 = vrot.lane.b32.xlu0 %v512, 113
        %v558 = vpop.permute.xlu0 %557
        %v559 = vsel %vm384, %v556, %v558
        %v560 = vsel %vm384, %v558, %v556
        %v561 = vmul.f32 %v559, %v390
        %v562 = vmul.f32 %v560, %v394
        %563 = vrot.lane.b32.xlu0 %v511, 112
        %v564 = vpop.permute.xlu0 %563
        %565 = vrot.lane.b32.xlu0 %v512, 112
        %v566 = vpop.permute.xlu0 %565
        %v567 = vsel %vm401, %v564, %v566
        %v568 = vsel %vm401, %v566, %v564
        %v569 = vmul.f32 %v567, %v407
        %v570 = vmul.f32 %v568, %v411
        %571 = vrot.lane.b32.xlu0 %v511, 111
        %v572 = vpop.permute.xlu0 %571
        %573 = vrot.lane.b32.xlu0 %v512, 111
        %v574 = vpop.permute.xlu0 %573
        %v575 = vsel %vm418, %v572, %v574
        %v576 = vsel %vm418, %v574, %v572
        %v577 = vmul.f32 %v575, %v424
        %v578 = vmul.f32 %v576, %v428
        %580 = vset.pattern.permute.xlu0 0
        %581 = vperm.xlu0 %580, %v514
        %v582 = vpop.permute.xlu0 %581
        %v585 = vsel %vm436, %v513, 0
        %587 = vmatprep.subr.mxu0 0.0
        %588 = vmatpush1.msra.mxu0 0.0
        %589 = vmatprep.subr.mxu0 0.0
        %590 = vmatpush1.msra.mxu0 0.0
        %591 = vmatprep.subr.mxu0 0.0
        %592 = vmatpush1.msra.mxu0 0.0
        %593 = vmatprep.subr.mxu0 0.0
        %594 = vmatpush1.msra.mxu0 0.0
        %595 = vmatprep.subr.mxu0 0.0
        %596 = vmatpush1.msra.mxu0 0.0
        %597 = vmatprep.subr.mxu0 0.0
        %598 = vmatpush1.msra.mxu0 0.0
        %599 = vmatprep.subr.mxu0 0.0
        %600 = vmatpush1.msra.mxu0 0.0
        %601 = vmatprep.subr.mxu0 %v578
        %602 = vmatpush1.msra.mxu0 %v577
        %603 = vmatprep.subr.mxu0 %v570
        %604 = vmatpush1.msra.mxu0 %v569
        %605 = vmatprep.subr.mxu0 %v562
        %606 = vmatpush1.msra.mxu0 %v561
        %607 = vmatprep.subr.mxu0 %v554
        %608 = vmatpush1.msra.mxu0 %v553
        %609 = vmatprep.subr.mxu0 %v512
        %610 = vmatpush1.msra.mxu0 %v511
        %611 = vmatprep.subr.mxu0 %v546
        %612 = vmatpush1.msra.mxu0 %v545
        %613 = vmatprep.subr.mxu0 %v538
        %614 = vmatpush1.msra.mxu0 %v537
        %615 = vmatprep.subr.mxu0 %v530
        %616 = vmatpush1.msra.mxu0 %v529
        %617 = vmatprep.subr.mxu0 %v522
        %618 = vmatpush1.msra.mxu0 %v521
        %619 = vmatprep.subr.mxu0 0.0
        %620 = vmatpush2.msra.mxu0 0.0
        %621 = vmatprep.subr.mxu0 0.0
        %622 = vmatpush2.msra.mxu0 0.0
        %623 = vmatprep.subr.mxu0 0.0
        %624 = vmatpush2.msra.mxu0 0.0
        %625 = vmatprep.subr.mxu0 0.0
        %626 = vmatpush2.msra.mxu0 0.0
        %627 = vmatprep.subr.mxu0 0.0
        %628 = vmatpush2.msra.mxu0 0.0
        %629 = vmatprep.subr.mxu0 0.0
        %630 = vmatpush2.msra.mxu0 0.0
        %631 = vmatprep.subr.mxu0 0.0
        %632 = vmatpush2.msra.mxu0 0.0
        %633 = vmatprep.subr.mxu0 0.0
        %634 = vmatpush2.msra.mxu0 0.0
        %635 = vmatprep.subr.mxu0 0.0
        %636 = vmatpush2.msra.mxu0 0.0
        %637 = vmatprep.subr.mxu0 0.0
        %638 = vmatpush2.msra.mxu0 0.0
        %639 = vmatprep.subr.mxu0 0.0
        %640 = vmatpush2.msra.mxu0 0.0
        %641 = vmatprep.subr.mxu0 0.0
        %642 = vmatpush2.msra.mxu0 0.0
        %643 = vmatprep.subr.mxu0 0.0
        %644 = vmatpush2.msra.mxu0 0.0
        %645 = vmatprep.subr.mxu0 0.0
        %646 = vmatpush2.msra.mxu0 0.0
        %647 = vmatprep.subr.mxu0 0.0
        %648 = vmatpush2.msra.mxu0 0.0
        %649 = vmatprep.subr.mxu0 0.0
        %650 = vmatpush2.msra.mxu0 0.0
        %651 = vmatprep.mubr.f32.mxu0 0.0
        %652 = vmatmul.mubr.f32.gmra.mxu0 %v585
        %v653 = vpop.f32.mrf.mxu0
        %v654 = vadd.f32 %v582, %v653
        %v655 = vpop.f32.mrf.mxu0
        %v656 = vadd.f32 %v582, %v655
        %657 = vdwg.mxu0
        %v658 = vadd.f32 %v285, %v654
        %v659 = vadd.f32 %v286, %v656
        %660 = vst [vmem:[%s282] sm:$0xff] %v658
        %661 = vst [vmem:[%s282 + $0x8] sm:$0xff] %v659
        %s662 = sand.u32 %s163, 1
        %s663 = scalar_lea.sflag [#allocation4], %s662
        %s664 = sand.u32 %s163, 1
        %s665 = smul.addr %s664, 16
        %s666 = scalar_lea.vmem [#allocation7], %s665
        // Predicated region
        $region53: #{tpu_custom_call.1} parent=43 // pred_check
          %p667 = pneg %p173
        $region54: #{tpu_custom_call.1} parent=43 // pred_check_branch
          %669 = sbr.rel (%p667) target = $region56
        $region55: #{tpu_custom_call.1} parent=43 // pred_region
          %s670 = smul.u32 2, %s24
          %s672 = ssub.s32 256, 256
          %673 = vsyncadd %s663, %s672
          %s674 = smul.addr %s670, 128
          %s675 = scalar_lea.hbm %s6, %s674
          %s677 = sshll.u32 %s666, 4
          %s678 = int_to_ptr.vmem [resolvable:$true] %s677
          %680 = dma.vmem_to_hbm [thread:$0]  %s678, 256, %s675, %s663
        $region56: #{tpu_custom_call.1} parent=43 // pred_fallthru
          _
      $region44: #{tpu_custom_call.1} parent=5 // pred_fallthru
        _
      %p681 = scmp.le.s32.totalorder 2, %s19
      // Predicated region
      $region57: #{tpu_custom_call.1} parent=5 // pred_check
        %p682 = pneg %p681
      $region58: #{tpu_custom_call.1} parent=5 // pred_check_branch
        %684 = sbr.rel (%p682) target = $region60
      $region59: #{tpu_custom_call.1} parent=5 // pred_region
        %s685 = ssub.s32 %s19, 2
        // Predicated region
        $region61: #{tpu_custom_call.1} parent=59 // pred_check
          %p686 = pneg %p179
        $region62: #{tpu_custom_call.1} parent=59 // pred_check_branch
          %688 = sbr.rel (%p686) target = $region64
        $region63: #{tpu_custom_call.1} parent=59 // pred_region
          %s689 = sand.u32 %s164, 1
          %s690 = scalar_lea.sflag [#allocation4], %s689
          %s691 = sand.u32 %s164, 1
          %s692 = smul.addr %s691, 16
          %s693 = scalar_lea.vmem [#allocation7], %s692
          %694 = dma.done %s690, 256
        $region64: #{tpu_custom_call.1} parent=59 // pred_fallthru
          _
      $region60: #{tpu_custom_call.1} parent=5 // pred_fallthru
        _
    $region6: #{tpu_custom_call.1} parent=1 // loop_footer
      %s23 = sadd.s32 1, %s19
    $region7: #{tpu_custom_call.1} parent=1 // loop_footer_branch
      %18 = sbr.rel target = $region3
    $region8: #{tpu_custom_call.1} parent=1 // loop_exit
      _
    %695 = vsyncpa [#allocation3], 1
    %s696 = scalar_lea.sflag [#allocation3], 1
    %697 = vsyncpa %s696, 1
    %698 = vsyncpa [#allocation6], 1
    %699 = vsyncpa [#allocation4], 1
    %s700 = scalar_lea.sflag [#allocation4], 1
    %701 = vsyncpa %s700, 1

</llo_original>
